<compile_context>
chip_gen: v7x
topology: tpu7x:2x2x1
jax: 0.10.0
libtpu: 0.0.40
codegen_flags: <defaults>
</compile_context>

<pallas_src>
import jax
import jax.numpy as jnp
from jax.experimental import pallas as pl
from jax.experimental.pallas import tpu as pltpu

# Problem sizes implied by the module (small, deterministic).
SEQ_LEN = 8
NUM_HID = 32
VOCAB_SIZE = 4
BATCH = 2

LANE = 128          # TPU vreg lane width; output slab is padded to this.
SUBLANE = 8         # row blocks must be a multiple of this
LEAKY_SLOPE = 0.01  # PyTorch nn.LeakyReLU default negative_slope


def _round_up(n, m):
    return ((n + m - 1) // m) * m


def flow_mlp_kernel(x_ref, w1_ref, b1_ref, w2_ref, b2_ref, o_ref):
    """One row-block of the MLP: VPU broadcast-MAD contraction -> bias ->
    LeakyReLU -> VPU contraction -> bias -> exp -> lane-dense store."""
    x = x_ref[...]           # [TB, SEQ_LEN]    f32
    w1 = w1_ref[...]         # [SEQ_LEN, NUM_HID]
    b1 = b1_ref[...]         # [1, NUM_HID]
    w2 = w2_ref[...]         # [NUM_HID, LANE]  (zero-padded past VOCAB_SIZE)
    b2 = b2_ref[...]         # [1, LANE]        (zero-padded past VOCAB_SIZE)

    tb = x.shape[0]

    # ---- Layer 1: x @ W1  (K = SEQ_LEN = 8), fully unrolled on the VPU.
    h = jnp.zeros((tb, NUM_HID), jnp.float32)
    for k in range(SEQ_LEN):
        h = h + x[:, k:k + 1] * w1[k:k + 1, :]
    h = h + b1                                    # single broadcast bias add
    h = jnp.where(h >= 0, h, LEAKY_SLOPE * h)     # LeakyReLU

    # ---- Layer 2: h @ W2  (K = NUM_HID = 32), fully unrolled on the VPU.
    y = jnp.zeros((tb, LANE), jnp.float32)
    for k in range(NUM_HID):
        y = y + h[:, k:k + 1] * w2[k:k + 1, :]
    y = y + b2

    # exp() of the zero-padded lanes is exp(0)=1; they are sliced off in the
    # wrapper. Full-width (128-lane) store -> unmasked vst.
    o_ref[...] = jnp.exp(y)


def flow_model_forward(x, w1, b1, w2, b2):
    """x: [B, SEQ_LEN] f32 -> [B, VOCAB_SIZE] f32 (== mlp(x).exp()).

    Handles arbitrary batch B (e.g. many rollout timesteps stacked together)
    by padding rows to a sublane-aligned row block and gridding over blocks.
    """
    B = x.shape[0]

    # Pick a row block: small batches get one sublane-aligned block; large
    # batches get 128-row blocks gridded (and megacore-shardable on v7x).
    if B <= 128:
        row_block = max(SUBLANE, _round_up(B, SUBLANE))
        b_pad = row_block
    else:
        row_block = 128
        b_pad = _round_up(B, row_block)
    if b_pad != B:
        x = jnp.pad(x, ((0, b_pad - B), (0, 0)))

    # Zero-pad the output projection to a lane-dense 128-wide slab.
    w2_pad = jnp.zeros((NUM_HID, LANE), jnp.float32).at[:, :VOCAB_SIZE].set(w2)
    b2_pad = jnp.zeros((1, LANE), jnp.float32).at[:, :VOCAB_SIZE].set(b2)

    grid = (b_pad // row_block,)
    out = pl.pallas_call(
        flow_mlp_kernel,
        out_shape=jax.ShapeDtypeStruct((b_pad, LANE), jnp.float32),
        grid=grid,
        in_specs=[
            # Activations stream over the grid axis.
            pl.BlockSpec((row_block, SEQ_LEN), lambda i: (i, 0)),
            # Weights/biases: same block every grid step -> stay resident.
            pl.BlockSpec((SEQ_LEN, NUM_HID), lambda i: (0, 0)),
            pl.BlockSpec((1, NUM_HID), lambda i: (0, 0)),
            pl.BlockSpec((NUM_HID, LANE), lambda i: (0, 0)),
            pl.BlockSpec((1, LANE), lambda i: (0, 0)),
        ],
        out_specs=pl.BlockSpec((row_block, LANE), lambda i: (i, 0)),
        compiler_params=pltpu.CompilerParams(
            dimension_semantics=("parallel",)),
    )(x, w1, b1, w2_pad, b2_pad)

    return out[:B, :VOCAB_SIZE]


def init_params(key):
    """Deterministic init matching nn.Linear shapes (stored as [in, out])."""
    k1, k2, k3, k4 = jax.random.split(key, 4)
    # nn.Linear default: U(-1/sqrt(fan_in), 1/sqrt(fan_in))
    lim1 = 1.0 / jnp.sqrt(SEQ_LEN)
    lim2 = 1.0 / jnp.sqrt(NUM_HID)
    w1 = jax.random.uniform(k1, (SEQ_LEN, NUM_HID), jnp.float32, -lim1, lim1)
    b1 = jax.random.uniform(k2, (1, NUM_HID), jnp.float32, -lim1, lim1)
    w2 = jax.random.uniform(k3, (NUM_HID, VOCAB_SIZE), jnp.float32, -lim2, lim2)
    b2 = jax.random.uniform(k4, (1, VOCAB_SIZE), jnp.float32, -lim2, lim2)
    return w1, b1, w2, b2


def reference_forward(x, w1, b1, w2, b2):
    h = x @ w1 + b1
    h = jnp.where(h >= 0, h, LEAKY_SLOPE * h)
    return jnp.exp(h @ w2 + b2)


# TODO(synk): get_action (Categorical sampling) is host-side utility logic,
# not part of the forward hot path; it is left out of the kernel.

if __name__ == "__main__":
    key = jax.random.PRNGKey(0)
    kx, kp, kb = jax.random.split(key, 3)
    w1, b1, w2, b2 = init_params(kp)

    # Small case matching the module (batch=2).
    x = jax.random.normal(kx, (BATCH, SEQ_LEN), jnp.float32)
    out = jax.block_until_ready(flow_model_forward(x, w1, b1, w2, b2))
    ref = reference_forward(x, w1, b1, w2, b2)
    assert out.shape == (BATCH, VOCAB_SIZE)
    assert jnp.allclose(out, ref, rtol=1e-5, atol=1e-5)

    # Batched-rollout case: many timesteps in one launch (grid > 1),
    # exercising the resident-weight / parallel-grid path.
    xb = jax.random.normal(kb, (256, SEQ_LEN), jnp.float32)
    outb = jax.block_until_ready(flow_model_forward(xb, w1, b1, w2, b2))
    refb = reference_forward(xb, w1, b1, w2, b2)
    assert outb.shape == (256, VOCAB_SIZE)
    assert jnp.allclose(outb, refb, rtol=1e-5, atol=1e-5)

    print("KERNEL_OK")
</pallas_src>

<mosaic_0001>
module attributes {stable_mosaic.version = 11 : i64} {
  func.func @flow_mlp_kernel(%arg0: i32, %arg1: memref<8x8xf32, #tpu.memory_space<vmem>>, %arg2: memref<8x32xf32, #tpu.memory_space<vmem>>, %arg3: memref<1x32xf32, #tpu.memory_space<vmem>>, %arg4: memref<32x128xf32, #tpu.memory_space<vmem>>, %arg5: memref<1x128xf32, #tpu.memory_space<vmem>>, %arg6: memref<8x128xf32, #tpu.memory_space<vmem>>) attributes {dimension_semantics = [#tpu.dimension_semantics<parallel>], iteration_bounds = array<i64: 1>, scalar_prefetch = 0 : i64, scratch_operands = 0 : i64, tpu.core_type = #tpu.core_type<tc>, window_params = [{transform_indices = @transform_0, window_bounds = array<i64: 8, 8>}, {pipeline_mode = #tpu.pipeline_mode<synchronous>, transform_indices = @transform_1, window_bounds = array<i64: 8, 32>}, {pipeline_mode = #tpu.pipeline_mode<synchronous>, transform_indices = @transform_2, window_bounds = array<i64: 1, 32>}, {pipeline_mode = #tpu.pipeline_mode<synchronous>, transform_indices = @transform_3, window_bounds = array<i64: 32, 128>}, {pipeline_mode = #tpu.pipeline_mode<synchronous>, transform_indices = @transform_4, window_bounds = array<i64: 1, 128>}, {transform_indices = @transform_5, window_bounds = array<i64: 8, 128>}]} {
    %c0 = arith.constant 0 : index
    %c0_0 = arith.constant 0 : index
    %0 = vector.load %arg1[%c0, %c0_0] : memref<8x8xf32, #tpu.memory_space<vmem>>, vector<8x8xf32>
    %c0_1 = arith.constant 0 : index
    %c0_2 = arith.constant 0 : index
    %1 = vector.load %arg2[%c0_1, %c0_2] : memref<8x32xf32, #tpu.memory_space<vmem>>, vector<8x32xf32>
    %c0_3 = arith.constant 0 : index
    %c0_4 = arith.constant 0 : index
    %2 = vector.load %arg3[%c0_3, %c0_4] : memref<1x32xf32, #tpu.memory_space<vmem>>, vector<1x32xf32>
    %c0_5 = arith.constant 0 : index
    %c0_6 = arith.constant 0 : index
    %3 = vector.load %arg4[%c0_5, %c0_6] : memref<32x128xf32, #tpu.memory_space<vmem>>, vector<32x128xf32>
    %c0_7 = arith.constant 0 : index
    %c0_8 = arith.constant 0 : index
    %4 = vector.load %arg5[%c0_7, %c0_8] : memref<1x128xf32, #tpu.memory_space<vmem>>, vector<1x128xf32>
    %cst = arith.constant 0.000000e+00 : f32
    %5 = vector.broadcast %cst : f32 to vector<8x32xf32>
    %6 = vector.extract_strided_slice %0 {offsets = [0, 0], sizes = [8, 1], strides = [1, 1]} : vector<8x8xf32> to vector<8x1xf32>
    %7 = vector.extract_strided_slice %1 {offsets = [0, 0], sizes = [1, 32], strides = [1, 1]} : vector<8x32xf32> to vector<1x32xf32>
    %8 = vector.broadcast %6 : vector<8x1xf32> to vector<8x32xf32>
    %9 = vector.broadcast %7 : vector<1x32xf32> to vector<8x32xf32>
    %10 = arith.mulf %8, %9 : vector<8x32xf32>
    %11 = arith.addf %5, %10 : vector<8x32xf32>
    %12 = vector.extract_strided_slice %0 {offsets = [0, 1], sizes = [8, 1], strides = [1, 1]} : vector<8x8xf32> to vector<8x1xf32>
    %13 = vector.extract_strided_slice %1 {offsets = [1, 0], sizes = [1, 32], strides = [1, 1]} : vector<8x32xf32> to vector<1x32xf32>
    %14 = vector.broadcast %12 : vector<8x1xf32> to vector<8x32xf32>
    %15 = vector.broadcast %13 : vector<1x32xf32> to vector<8x32xf32>
    %16 = arith.mulf %14, %15 : vector<8x32xf32>
    %17 = arith.addf %11, %16 : vector<8x32xf32>
    %18 = vector.extract_strided_slice %0 {offsets = [0, 2], sizes = [8, 1], strides = [1, 1]} : vector<8x8xf32> to vector<8x1xf32>
    %19 = vector.extract_strided_slice %1 {offsets = [2, 0], sizes = [1, 32], strides = [1, 1]} : vector<8x32xf32> to vector<1x32xf32>
    %20 = vector.broadcast %18 : vector<8x1xf32> to vector<8x32xf32>
    %21 = vector.broadcast %19 : vector<1x32xf32> to vector<8x32xf32>
    %22 = arith.mulf %20, %21 : vector<8x32xf32>
    %23 = arith.addf %17, %22 : vector<8x32xf32>
    %24 = vector.extract_strided_slice %0 {offsets = [0, 3], sizes = [8, 1], strides = [1, 1]} : vector<8x8xf32> to vector<8x1xf32>
    %25 = vector.extract_strided_slice %1 {offsets = [3, 0], sizes = [1, 32], strides = [1, 1]} : vector<8x32xf32> to vector<1x32xf32>
    %26 = vector.broadcast %24 : vector<8x1xf32> to vector<8x32xf32>
    %27 = vector.broadcast %25 : vector<1x32xf32> to vector<8x32xf32>
    %28 = arith.mulf %26, %27 : vector<8x32xf32>
    %29 = arith.addf %23, %28 : vector<8x32xf32>
    %30 = vector.extract_strided_slice %0 {offsets = [0, 4], sizes = [8, 1], strides = [1, 1]} : vector<8x8xf32> to vector<8x1xf32>
    %31 = vector.extract_strided_slice %1 {offsets = [4, 0], sizes = [1, 32], strides = [1, 1]} : vector<8x32xf32> to vector<1x32xf32>
    %32 = vector.broadcast %30 : vector<8x1xf32> to vector<8x32xf32>
    %33 = vector.broadcast %31 : vector<1x32xf32> to vector<8x32xf32>
    %34 = arith.mulf %32, %33 : vector<8x32xf32>
    %35 = arith.addf %29, %34 : vector<8x32xf32>
    %36 = vector.extract_strided_slice %0 {offsets = [0, 5], sizes = [8, 1], strides = [1, 1]} : vector<8x8xf32> to vector<8x1xf32>
    %37 = vector.extract_strided_slice %1 {offsets = [5, 0], sizes = [1, 32], strides = [1, 1]} : vector<8x32xf32> to vector<1x32xf32>
    %38 = vector.broadcast %36 : vector<8x1xf32> to vector<8x32xf32>
    %39 = vector.broadcast %37 : vector<1x32xf32> to vector<8x32xf32>
    %40 = arith.mulf %38, %39 : vector<8x32xf32>
    %41 = arith.addf %35, %40 : vector<8x32xf32>
    %42 = vector.extract_strided_slice %0 {offsets = [0, 6], sizes = [8, 1], strides = [1, 1]} : vector<8x8xf32> to vector<8x1xf32>
    %43 = vector.extract_strided_slice %1 {offsets = [6, 0], sizes = [1, 32], strides = [1, 1]} : vector<8x32xf32> to vector<1x32xf32>
    %44 = vector.broadcast %42 : vector<8x1xf32> to vector<8x32xf32>
    %45 = vector.broadcast %43 : vector<1x32xf32> to vector<8x32xf32>
    %46 = arith.mulf %44, %45 : vector<8x32xf32>
    %47 = arith.addf %41, %46 : vector<8x32xf32>
    %48 = vector.extract_strided_slice %0 {offsets = [0, 7], sizes = [8, 1], strides = [1, 1]} : vector<8x8xf32> to vector<8x1xf32>
    %49 = vector.extract_strided_slice %1 {offsets = [7, 0], sizes = [1, 32], strides = [1, 1]} : vector<8x32xf32> to vector<1x32xf32>
    %50 = vector.broadcast %48 : vector<8x1xf32> to vector<8x32xf32>
    %51 = vector.broadcast %49 : vector<1x32xf32> to vector<8x32xf32>
    %52 = arith.mulf %50, %51 : vector<8x32xf32>
    %53 = arith.addf %47, %52 : vector<8x32xf32>
    %54 = vector.broadcast %2 : vector<1x32xf32> to vector<8x32xf32>
    %55 = arith.addf %53, %54 : vector<8x32xf32>
    %cst_9 = arith.constant 0.000000e+00 : f32
    %56 = vector.broadcast %cst_9 : f32 to vector<8x32xf32>
    %57 = arith.cmpf oge, %55, %56 : vector<8x32xf32>
    %cst_10 = arith.constant 0.00999999977 : f32
    %58 = vector.broadcast %cst_10 : f32 to vector<8x32xf32>
    %59 = arith.mulf %58, %55 : vector<8x32xf32>
    %60 = arith.select %57, %55, %59 : vector<8x32xi1>, vector<8x32xf32>
    %cst_11 = arith.constant 0.000000e+00 : f32
    %61 = vector.broadcast %cst_11 : f32 to vector<8x128xf32>
    %62 = vector.extract_strided_slice %60 {offsets = [0, 0], sizes = [8, 1], strides = [1, 1]} : vector<8x32xf32> to vector<8x1xf32>
    %63 = vector.extract_strided_slice %3 {offsets = [0, 0], sizes = [1, 128], strides = [1, 1]} : vector<32x128xf32> to vector<1x128xf32>
    %64 = vector.broadcast %62 : vector<8x1xf32> to vector<8x128xf32>
    %65 = vector.broadcast %63 : vector<1x128xf32> to vector<8x128xf32>
    %66 = arith.mulf %64, %65 : vector<8x128xf32>
    %67 = arith.addf %61, %66 : vector<8x128xf32>
    %68 = vector.extract_strided_slice %60 {offsets = [0, 1], sizes = [8, 1], strides = [1, 1]} : vector<8x32xf32> to vector<8x1xf32>
    %69 = vector.extract_strided_slice %3 {offsets = [1, 0], sizes = [1, 128], strides = [1, 1]} : vector<32x128xf32> to vector<1x128xf32>
    %70 = vector.broadcast %68 : vector<8x1xf32> to vector<8x128xf32>
    %71 = vector.broadcast %69 : vector<1x128xf32> to vector<8x128xf32>
    %72 = arith.mulf %70, %71 : vector<8x128xf32>
    %73 = arith.addf %67, %72 : vector<8x128xf32>
    %74 = vector.extract_strided_slice %60 {offsets = [0, 2], sizes = [8, 1], strides = [1, 1]} : vector<8x32xf32> to vector<8x1xf32>
    %75 = vector.extract_strided_slice %3 {offsets = [2, 0], sizes = [1, 128], strides = [1, 1]} : vector<32x128xf32> to vector<1x128xf32>
    %76 = vector.broadcast %74 : vector<8x1xf32> to vector<8x128xf32>
    %77 = vector.broadcast %75 : vector<1x128xf32> to vector<8x128xf32>
    %78 = arith.mulf %76, %77 : vector<8x128xf32>
    %79 = arith.addf %73, %78 : vector<8x128xf32>
    %80 = vector.extract_strided_slice %60 {offsets = [0, 3], sizes = [8, 1], strides = [1, 1]} : vector<8x32xf32> to vector<8x1xf32>
    %81 = vector.extract_strided_slice %3 {offsets = [3, 0], sizes = [1, 128], strides = [1, 1]} : vector<32x128xf32> to vector<1x128xf32>
    %82 = vector.broadcast %80 : vector<8x1xf32> to vector<8x128xf32>
    %83 = vector.broadcast %81 : vector<1x128xf32> to vector<8x128xf32>
    %84 = arith.mulf %82, %83 : vector<8x128xf32>
    %85 = arith.addf %79, %84 : vector<8x128xf32>
    %86 = vector.extract_strided_slice %60 {offsets = [0, 4], sizes = [8, 1], strides = [1, 1]} : vector<8x32xf32> to vector<8x1xf32>
    %87 = vector.extract_strided_slice %3 {offsets = [4, 0], sizes = [1, 128], strides = [1, 1]} : vector<32x128xf32> to vector<1x128xf32>
    %88 = vector.broadcast %86 : vector<8x1xf32> to vector<8x128xf32>
    %89 = vector.broadcast %87 : vector<1x128xf32> to vector<8x128xf32>
    %90 = arith.mulf %88, %89 : vector<8x128xf32>
    %91 = arith.addf %85, %90 : vector<8x128xf32>
    %92 = vector.extract_strided_slice %60 {offsets = [0, 5], sizes = [8, 1], strides = [1, 1]} : vector<8x32xf32> to vector<8x1xf32>
    %93 = vector.extract_strided_slice %3 {offsets = [5, 0], sizes = [1, 128], strides = [1, 1]} : vector<32x128xf32> to vector<1x128xf32>
    %94 = vector.broadcast %92 : vector<8x1xf32> to vector<8x128xf32>
    %95 = vector.broadcast %93 : vector<1x128xf32> to vector<8x128xf32>
    %96 = arith.mulf %94, %95 : vector<8x128xf32>
    %97 = arith.addf %91, %96 : vector<8x128xf32>
    %98 = vector.extract_strided_slice %60 {offsets = [0, 6], sizes = [8, 1], strides = [1, 1]} : vector<8x32xf32> to vector<8x1xf32>
    %99 = vector.extract_strided_slice %3 {offsets = [6, 0], sizes = [1, 128], strides = [1, 1]} : vector<32x128xf32> to vector<1x128xf32>
    %100 = vector.broadcast %98 : vector<8x1xf32> to vector<8x128xf32>
    %101 = vector.broadcast %99 : vector<1x128xf32> to vector<8x128xf32>
    %102 = arith.mulf %100, %101 : vector<8x128xf32>
    %103 = arith.addf %97, %102 : vector<8x128xf32>
    %104 = vector.extract_strided_slice %60 {offsets = [0, 7], sizes = [8, 1], strides = [1, 1]} : vector<8x32xf32> to vector<8x1xf32>
    %105 = vector.extract_strided_slice %3 {offsets = [7, 0], sizes = [1, 128], strides = [1, 1]} : vector<32x128xf32> to vector<1x128xf32>
    %106 = vector.broadcast %104 : vector<8x1xf32> to vector<8x128xf32>
    %107 = vector.broadcast %105 : vector<1x128xf32> to vector<8x128xf32>
    %108 = arith.mulf %106, %107 : vector<8x128xf32>
    %109 = arith.addf %103, %108 : vector<8x128xf32>
    %110 = vector.extract_strided_slice %60 {offsets = [0, 8], sizes = [8, 1], strides = [1, 1]} : vector<8x32xf32> to vector<8x1xf32>
    %111 = vector.extract_strided_slice %3 {offsets = [8, 0], sizes = [1, 128], strides = [1, 1]} : vector<32x128xf32> to vector<1x128xf32>
    %112 = vector.broadcast %110 : vector<8x1xf32> to vector<8x128xf32>
    %113 = vector.broadcast %111 : vector<1x128xf32> to vector<8x128xf32>
    %114 = arith.mulf %112, %113 : vector<8x128xf32>
    %115 = arith.addf %109, %114 : vector<8x128xf32>
    %116 = vector.extract_strided_slice %60 {offsets = [0, 9], sizes = [8, 1], strides = [1, 1]} : vector<8x32xf32> to vector<8x1xf32>
    %117 = vector.extract_strided_slice %3 {offsets = [9, 0], sizes = [1, 128], strides = [1, 1]} : vector<32x128xf32> to vector<1x128xf32>
    %118 = vector.broadcast %116 : vector<8x1xf32> to vector<8x128xf32>
    %119 = vector.broadcast %117 : vector<1x128xf32> to vector<8x128xf32>
    %120 = arith.mulf %118, %119 : vector<8x128xf32>
    %121 = arith.addf %115, %120 : vector<8x128xf32>
    %122 = vector.extract_strided_slice %60 {offsets = [0, 10], sizes = [8, 1], strides = [1, 1]} : vector<8x32xf32> to vector<8x1xf32>
    %123 = vector.extract_strided_slice %3 {offsets = [10, 0], sizes = [1, 128], strides = [1, 1]} : vector<32x128xf32> to vector<1x128xf32>
    %124 = vector.broadcast %122 : vector<8x1xf32> to vector<8x128xf32>
    %125 = vector.broadcast %123 : vector<1x128xf32> to vector<8x128xf32>
    %126 = arith.mulf %124, %125 : vector<8x128xf32>
    %127 = arith.addf %121, %126 : vector<8x128xf32>
    %128 = vector.extract_strided_slice %60 {offsets = [0, 11], sizes = [8, 1], strides = [1, 1]} : vector<8x32xf32> to vector<8x1xf32>
    %129 = vector.extract_strided_slice %3 {offsets = [11, 0], sizes = [1, 128], strides = [1, 1]} : vector<32x128xf32> to vector<1x128xf32>
    %130 = vector.broadcast %128 : vector<8x1xf32> to vector<8x128xf32>
    %131 = vector.broadcast %129 : vector<1x128xf32> to vector<8x128xf32>
    %132 = arith.mulf %130, %131 : vector<8x128xf32>
    %133 = arith.addf %127, %132 : vector<8x128xf32>
    %134 = vector.extract_strided_slice %60 {offsets = [0, 12], sizes = [8, 1], strides = [1, 1]} : vector<8x32xf32> to vector<8x1xf32>
    %135 = vector.extract_strided_slice %3 {offsets = [12, 0], sizes = [1, 128], strides = [1, 1]} : vector<32x128xf32> to vector<1x128xf32>
    %136 = vector.broadcast %134 : vector<8x1xf32> to vector<8x128xf32>
    %137 = vector.broadcast %135 : vector<1x128xf32> to vector<8x128xf32>
    %138 = arith.mulf %136, %137 : vector<8x128xf32>
    %139 = arith.addf %133, %138 : vector<8x128xf32>
    %140 = vector.extract_strided_slice %60 {offsets = [0, 13], sizes = [8, 1], strides = [1, 1]} : vector<8x32xf32> to vector<8x1xf32>
    %141 = vector.extract_strided_slice %3 {offsets = [13, 0], sizes = [1, 128], strides = [1, 1]} : vector<32x128xf32> to vector<1x128xf32>
    %142 = vector.broadcast %140 : vector<8x1xf32> to vector<8x128xf32>
    %143 = vector.broadcast %141 : vector<1x128xf32> to vector<8x128xf32>
    %144 = arith.mulf %142, %143 : vector<8x128xf32>
    %145 = arith.addf %139, %144 : vector<8x128xf32>
    %146 = vector.extract_strided_slice %60 {offsets = [0, 14], sizes = [8, 1], strides = [1, 1]} : vector<8x32xf32> to vector<8x1xf32>
    %147 = vector.extract_strided_slice %3 {offsets = [14, 0], sizes = [1, 128], strides = [1, 1]} : vector<32x128xf32> to vector<1x128xf32>
    %148 = vector.broadcast %146 : vector<8x1xf32> to vector<8x128xf32>
    %149 = vector.broadcast %147 : vector<1x128xf32> to vector<8x128xf32>
    %150 = arith.mulf %148, %149 : vector<8x128xf32>
    %151 = arith.addf %145, %150 : vector<8x128xf32>
    %152 = vector.extract_strided_slice %60 {offsets = [0, 15], sizes = [8, 1], strides = [1, 1]} : vector<8x32xf32> to vector<8x1xf32>
    %153 = vector.extract_strided_slice %3 {offsets = [15, 0], sizes = [1, 128], strides = [1, 1]} : vector<32x128xf32> to vector<1x128xf32>
    %154 = vector.broadcast %152 : vector<8x1xf32> to vector<8x128xf32>
    %155 = vector.broadcast %153 : vector<1x128xf32> to vector<8x128xf32>
    %156 = arith.mulf %154, %155 : vector<8x128xf32>
    %157 = arith.addf %151, %156 : vector<8x128xf32>
    %158 = vector.extract_strided_slice %60 {offsets = [0, 16], sizes = [8, 1], strides = [1, 1]} : vector<8x32xf32> to vector<8x1xf32>
    %159 = vector.extract_strided_slice %3 {offsets = [16, 0], sizes = [1, 128], strides = [1, 1]} : vector<32x128xf32> to vector<1x128xf32>
    %160 = vector.broadcast %158 : vector<8x1xf32> to vector<8x128xf32>
    %161 = vector.broadcast %159 : vector<1x128xf32> to vector<8x128xf32>
    %162 = arith.mulf %160, %161 : vector<8x128xf32>
    %163 = arith.addf %157, %162 : vector<8x128xf32>
    %164 = vector.extract_strided_slice %60 {offsets = [0, 17], sizes = [8, 1], strides = [1, 1]} : vector<8x32xf32> to vector<8x1xf32>
    %165 = vector.extract_strided_slice %3 {offsets = [17, 0], sizes = [1, 128], strides = [1, 1]} : vector<32x128xf32> to vector<1x128xf32>
    %166 = vector.broadcast %164 : vector<8x1xf32> to vector<8x128xf32>
    %167 = vector.broadcast %165 : vector<1x128xf32> to vector<8x128xf32>
    %168 = arith.mulf %166, %167 : vector<8x128xf32>
    %169 = arith.addf %163, %168 : vector<8x128xf32>
    %170 = vector.extract_strided_slice %60 {offsets = [0, 18], sizes = [8, 1], strides = [1, 1]} : vector<8x32xf32> to vector<8x1xf32>
    %171 = vector.extract_strided_slice %3 {offsets = [18, 0], sizes = [1, 128], strides = [1, 1]} : vector<32x128xf32> to vector<1x128xf32>
    %172 = vector.broadcast %170 : vector<8x1xf32> to vector<8x128xf32>
    %173 = vector.broadcast %171 : vector<1x128xf32> to vector<8x128xf32>
    %174 = arith.mulf %172, %173 : vector<8x128xf32>
    %175 = arith.addf %169, %174 : vector<8x128xf32>
    %176 = vector.extract_strided_slice %60 {offsets = [0, 19], sizes = [8, 1], strides = [1, 1]} : vector<8x32xf32> to vector<8x1xf32>
    %177 = vector.extract_strided_slice %3 {offsets = [19, 0], sizes = [1, 128], strides = [1, 1]} : vector<32x128xf32> to vector<1x128xf32>
    %178 = vector.broadcast %176 : vector<8x1xf32> to vector<8x128xf32>
    %179 = vector.broadcast %177 : vector<1x128xf32> to vector<8x128xf32>
    %180 = arith.mulf %178, %179 : vector<8x128xf32>
    %181 = arith.addf %175, %180 : vector<8x128xf32>
    %182 = vector.extract_strided_slice %60 {offsets = [0, 20], sizes = [8, 1], strides = [1, 1]} : vector<8x32xf32> to vector<8x1xf32>
    %183 = vector.extract_strided_slice %3 {offsets = [20, 0], sizes = [1, 128], strides = [1, 1]} : vector<32x128xf32> to vector<1x128xf32>
    %184 = vector.broadcast %182 : vector<8x1xf32> to vector<8x128xf32>
    %185 = vector.broadcast %183 : vector<1x128xf32> to vector<8x128xf32>
    %186 = arith.mulf %184, %185 : vector<8x128xf32>
    %187 = arith.addf %181, %186 : vector<8x128xf32>
    %188 = vector.extract_strided_slice %60 {offsets = [0, 21], sizes = [8, 1], strides = [1, 1]} : vector<8x32xf32> to vector<8x1xf32>
    %189 = vector.extract_strided_slice %3 {offsets = [21, 0], sizes = [1, 128], strides = [1, 1]} : vector<32x128xf32> to vector<1x128xf32>
    %190 = vector.broadcast %188 : vector<8x1xf32> to vector<8x128xf32>
    %191 = vector.broadcast %189 : vector<1x128xf32> to vector<8x128xf32>
    %192 = arith.mulf %190, %191 : vector<8x128xf32>
    %193 = arith.addf %187, %192 : vector<8x128xf32>
    %194 = vector.extract_strided_slice %60 {offsets = [0, 22], sizes = [8, 1], strides = [1, 1]} : vector<8x32xf32> to vector<8x1xf32>
    %195 = vector.extract_strided_slice %3 {offsets = [22, 0], sizes = [1, 128], strides = [1, 1]} : vector<32x128xf32> to vector<1x128xf32>
    %196 = vector.broadcast %194 : vector<8x1xf32> to vector<8x128xf32>
    %197 = vector.broadcast %195 : vector<1x128xf32> to vector<8x128xf32>
    %198 = arith.mulf %196, %197 : vector<8x128xf32>
    %199 = arith.addf %193, %198 : vector<8x128xf32>
    %200 = vector.extract_strided_slice %60 {offsets = [0, 23], sizes = [8, 1], strides = [1, 1]} : vector<8x32xf32> to vector<8x1xf32>
    %201 = vector.extract_strided_slice %3 {offsets = [23, 0], sizes = [1, 128], strides = [1, 1]} : vector<32x128xf32> to vector<1x128xf32>
    %202 = vector.broadcast %200 : vector<8x1xf32> to vector<8x128xf32>
    %203 = vector.broadcast %201 : vector<1x128xf32> to vector<8x128xf32>
    %204 = arith.mulf %202, %203 : vector<8x128xf32>
    %205 = arith.addf %199, %204 : vector<8x128xf32>
    %206 = vector.extract_strided_slice %60 {offsets = [0, 24], sizes = [8, 1], strides = [1, 1]} : vector<8x32xf32> to vector<8x1xf32>
    %207 = vector.extract_strided_slice %3 {offsets = [24, 0], sizes = [1, 128], strides = [1, 1]} : vector<32x128xf32> to vector<1x128xf32>
    %208 = vector.broadcast %206 : vector<8x1xf32> to vector<8x128xf32>
    %209 = vector.broadcast %207 : vector<1x128xf32> to vector<8x128xf32>
    %210 = arith.mulf %208, %209 : vector<8x128xf32>
    %211 = arith.addf %205, %210 : vector<8x128xf32>
    %212 = vector.extract_strided_slice %60 {offsets = [0, 25], sizes = [8, 1], strides = [1, 1]} : vector<8x32xf32> to vector<8x1xf32>
    %213 = vector.extract_strided_slice %3 {offsets = [25, 0], sizes = [1, 128], strides = [1, 1]} : vector<32x128xf32> to vector<1x128xf32>
    %214 = vector.broadcast %212 : vector<8x1xf32> to vector<8x128xf32>
    %215 = vector.broadcast %213 : vector<1x128xf32> to vector<8x128xf32>
    %216 = arith.mulf %214, %215 : vector<8x128xf32>
    %217 = arith.addf %211, %216 : vector<8x128xf32>
    %218 = vector.extract_strided_slice %60 {offsets = [0, 26], sizes = [8, 1], strides = [1, 1]} : vector<8x32xf32> to vector<8x1xf32>
    %219 = vector.extract_strided_slice %3 {offsets = [26, 0], sizes = [1, 128], strides = [1, 1]} : vector<32x128xf32> to vector<1x128xf32>
    %220 = vector.broadcast %218 : vector<8x1xf32> to vector<8x128xf32>
    %221 = vector.broadcast %219 : vector<1x128xf32> to vector<8x128xf32>
    %222 = arith.mulf %220, %221 : vector<8x128xf32>
    %223 = arith.addf %217, %222 : vector<8x128xf32>
    %224 = vector.extract_strided_slice %60 {offsets = [0, 27], sizes = [8, 1], strides = [1, 1]} : vector<8x32xf32> to vector<8x1xf32>
    %225 = vector.extract_strided_slice %3 {offsets = [27, 0], sizes = [1, 128], strides = [1, 1]} : vector<32x128xf32> to vector<1x128xf32>
    %226 = vector.broadcast %224 : vector<8x1xf32> to vector<8x128xf32>
    %227 = vector.broadcast %225 : vector<1x128xf32> to vector<8x128xf32>
    %228 = arith.mulf %226, %227 : vector<8x128xf32>
    %229 = arith.addf %223, %228 : vector<8x128xf32>
    %230 = vector.extract_strided_slice %60 {offsets = [0, 28], sizes = [8, 1], strides = [1, 1]} : vector<8x32xf32> to vector<8x1xf32>
    %231 = vector.extract_strided_slice %3 {offsets = [28, 0], sizes = [1, 128], strides = [1, 1]} : vector<32x128xf32> to vector<1x128xf32>
    %232 = vector.broadcast %230 : vector<8x1xf32> to vector<8x128xf32>
    %233 = vector.broadcast %231 : vector<1x128xf32> to vector<8x128xf32>
    %234 = arith.mulf %232, %233 : vector<8x128xf32>
    %235 = arith.addf %229, %234 : vector<8x128xf32>
    %236 = vector.extract_strided_slice %60 {offsets = [0, 29], sizes = [8, 1], strides = [1, 1]} : vector<8x32xf32> to vector<8x1xf32>
    %237 = vector.extract_strided_slice %3 {offsets = [29, 0], sizes = [1, 128], strides = [1, 1]} : vector<32x128xf32> to vector<1x128xf32>
    %238 = vector.broadcast %236 : vector<8x1xf32> to vector<8x128xf32>
    %239 = vector.broadcast %237 : vector<1x128xf32> to vector<8x128xf32>
    %240 = arith.mulf %238, %239 : vector<8x128xf32>
    %241 = arith.addf %235, %240 : vector<8x128xf32>
    %242 = vector.extract_strided_slice %60 {offsets = [0, 30], sizes = [8, 1], strides = [1, 1]} : vector<8x32xf32> to vector<8x1xf32>
    %243 = vector.extract_strided_slice %3 {offsets = [30, 0], sizes = [1, 128], strides = [1, 1]} : vector<32x128xf32> to vector<1x128xf32>
    %244 = vector.broadcast %242 : vector<8x1xf32> to vector<8x128xf32>
    %245 = vector.broadcast %243 : vector<1x128xf32> to vector<8x128xf32>
    %246 = arith.mulf %244, %245 : vector<8x128xf32>
    %247 = arith.addf %241, %246 : vector<8x128xf32>
    %248 = vector.extract_strided_slice %60 {offsets = [0, 31], sizes = [8, 1], strides = [1, 1]} : vector<8x32xf32> to vector<8x1xf32>
    %249 = vector.extract_strided_slice %3 {offsets = [31, 0], sizes = [1, 128], strides = [1, 1]} : vector<32x128xf32> to vector<1x128xf32>
    %250 = vector.broadcast %248 : vector<8x1xf32> to vector<8x128xf32>
    %251 = vector.broadcast %249 : vector<1x128xf32> to vector<8x128xf32>
    %252 = arith.mulf %250, %251 : vector<8x128xf32>
    %253 = arith.addf %247, %252 : vector<8x128xf32>
    %254 = vector.broadcast %4 : vector<1x128xf32> to vector<8x128xf32>
    %255 = arith.addf %253, %254 : vector<8x128xf32>
    %256 = math.exp %255 : vector<8x128xf32>
    %c0_12 = arith.constant 0 : index
    %c0_13 = arith.constant 0 : index
    %257 = vector.load %arg6[%c0_12, %c0_13] : memref<8x128xf32, #tpu.memory_space<vmem>>, vector<8x128xf32>
    tpu.vector_store %arg6[%c0_12, %c0_13], %256 {strides = array<i32>} : memref<8x128xf32, #tpu.memory_space<vmem>>, vector<8x128xf32>,
    return
  }
  func.func @transform_0(%arg0: i32) -> (i32, i32) {
    %c0_i32 = arith.constant 0 : i32
    %c0_i32_0 = arith.constant 0 : i32
    return %arg0, %c0_i32 : i32, i32
  }
  func.func @transform_1(%arg0: i32) -> (i32, i32) {
    %c0_i32 = arith.constant 0 : i32
    %c0_i32_0 = arith.constant 0 : i32
    %c0_i32_1 = arith.constant 0 : i32
    return %c0_i32, %c0_i32_0 : i32, i32
  }
  func.func @transform_2(%arg0: i32) -> (i32, i32) {
    %c0_i32 = arith.constant 0 : i32
    %c0_i32_0 = arith.constant 0 : i32
    %c0_i32_1 = arith.constant 0 : i32
    return %c0_i32, %c0_i32_0 : i32, i32
  }
  func.func @transform_3(%arg0: i32) -> (i32, i32) {
    %c0_i32 = arith.constant 0 : i32
    %c0_i32_0 = arith.constant 0 : i32
    %c0_i32_1 = arith.constant 0 : i32
    return %c0_i32, %c0_i32_0 : i32, i32
  }
  func.func @transform_4(%arg0: i32) -> (i32, i32) {
    %c0_i32 = arith.constant 0 : i32
    %c0_i32_0 = arith.constant 0 : i32
    %c0_i32_1 = arith.constant 0 : i32
    return %c0_i32, %c0_i32_0 : i32, i32
  }
  func.func @transform_5(%arg0: i32) -> (i32, i32) {
    %c0_i32 = arith.constant 0 : i32
    %c0_i32_0 = arith.constant 0 : i32
    return %arg0, %c0_i32 : i32, i32
  }
}

</mosaic_0001>

<llo_original>
// kernel: tpu_custom_call.1
$region0: #{tpu_custom_call.1}
  #allocation0 [shape = 'u32[]', space=smem, size = 0x4, offset = 0x4, fixed_abs, tag = 'smem constant byte address 0x4 - core index']
  #allocation1 [shape = 'u32[144,128]{1,0:T(1,128)}', space=vmem, size = 0x12000, scoped, tag = 'internal scratch']
  %s0 = inlined_call_operand.hbm [shape: f32[8,8], index: 0, kind: input, shape index: {}]
  %s1 = inlined_call_operand.hbm [shape: f32[8,32], index: 1, kind: input, shape index: {}]
  %s2 = inlined_call_operand.vmem [shape: f32[1,32], index: 2, kind: input, shape index: {}]
  %s3 = inlined_call_operand.hbm [shape: f32[32,128], index: 3, kind: input, shape index: {}]
  %s4 = inlined_call_operand.vmem [shape: f32[1,128], index: 4, kind: input, shape index: {}]
  %s5 = inlined_call_operand.hbm [shape: f32[8,128], index: 5, kind: output, shape index: {}]
  %s6 = sld [smem:[#allocation0]]
  $region42: #{tpu_custom_call.1} parent=0
    _
  %s8 = ssub.s32 1, %s6
  %s9 = scalar_select 0, %s8, %s6
  $region1: #{tpu_custom_call.1} parent=0
    #allocation2 [shape = 'u8[4096]{0}', space=vmem, size = 0x1000, scoped, tag = 'input window, operand 0, single buffered']
    #allocation3 [shape = 's32[1]{0}', space=sflag, size = 0x4, scoped, tag = 'scoped memory for tpu_custom_call.1']
    #allocation4 [shape = 's32[1]{0}', space=sflag, size = 0x4, scoped, tag = 'scoped memory for tpu_custom_call.1']
    #allocation5 [shape = 'u8[4096]{0}', space=vmem, size = 0x1000, scoped, tag = 'input window, operand 1, single buffered']
    #allocation6 [shape = 's32[1]{0}', space=sflag, size = 0x4, scoped, tag = 'scoped memory for tpu_custom_call.1']
    #allocation7 [shape = 'u8[16384]{0}', space=vmem, size = 0x4000, scoped, tag = 'input window, operand 3, single buffered']
    #allocation8 [shape = 'u8[4096]{0}', space=vmem, size = 0x1000, scoped, tag = 'output window, operand 0, single buffered']
    %10 = vsyncpa [#allocation3], 0
    %11 = vsyncpa [#allocation6], 0
    %12 = vsyncpa [#allocation4], 0
    // Predicated region
    $region2: #{tpu_custom_call.1} parent=1 // pred_check
      _
    $region3: #{tpu_custom_call.1} parent=1 // pred_check_branch
      %14 = sbr.rel (0) target = $region5
    $region4: #{tpu_custom_call.1} parent=1 // pred_region
      %s16 = ssub.s32 128, 128
      %17 = vsyncadd [#allocation3], %s16
      %s19 = sshll.u32 [#allocation2], 4
      %s20 = int_to_ptr.vmem [resolvable:$true] %s19
      %22 = dma.hbm_to_vmem [thread:$0]  %s0, 128, %s20, [#allocation3]
    $region5: #{tpu_custom_call.1} parent=1 // pred_fallthru
      _
    // Predicated region
    $region6: #{tpu_custom_call.1} parent=1 // pred_check
      _
    $region7: #{tpu_custom_call.1} parent=1 // pred_check_branch
      %24 = sbr.rel (0) target = $region9
    $region8: #{tpu_custom_call.1} parent=1 // pred_region
      %s26 = ssub.s32 128, 128
      %27 = vsyncadd [#allocation6], %s26
      %s29 = sshll.u32 [#allocation5], 4
      %s30 = int_to_ptr.vmem [resolvable:$true] %s29
      %32 = dma.hbm_to_vmem [thread:$0]  %s1, 128, %s30, [#allocation6]
    $region9: #{tpu_custom_call.1} parent=1 // pred_fallthru
      _
    // Predicated region
    $region10: #{tpu_custom_call.1} parent=1 // pred_check
      _
    $region11: #{tpu_custom_call.1} parent=1 // pred_check_branch
      %34 = sbr.rel (0) target = $region13
    $region12: #{tpu_custom_call.1} parent=1 // pred_region
      _
    $region13: #{tpu_custom_call.1} parent=1 // pred_fallthru
      _
    // Predicated region
    $region14: #{tpu_custom_call.1} parent=1 // pred_check
      _
    $region15: #{tpu_custom_call.1} parent=1 // pred_check_branch
      %36 = sbr.rel (0) target = $region17
    $region16: #{tpu_custom_call.1} parent=1 // pred_region
      %s38 = ssub.s32 512, 512
      %39 = vsyncadd [#allocation6], %s38
      %s40 = sshll.u32 [#allocation7], 4
      %s41 = int_to_ptr.vmem [resolvable:$true] %s40
      %46 = dma.hbm_to_vmem [thread:$0]  %s3, 512, %s41, [#allocation6], 128, 128, 8
    $region17: #{tpu_custom_call.1} parent=1 // pred_fallthru
      _
    // Predicated region
    $region18: #{tpu_custom_call.1} parent=1 // pred_check
      _
    $region19: #{tpu_custom_call.1} parent=1 // pred_check_branch
      %48 = sbr.rel (0) target = $region21
    $region20: #{tpu_custom_call.1} parent=1 // pred_region
      _
    $region21: #{tpu_custom_call.1} parent=1 // pred_fallthru
      _
    // Predicated region
    $region22: #{tpu_custom_call.1} parent=1 // pred_check
      _
    $region23: #{tpu_custom_call.1} parent=1 // pred_check_branch
      %50 = sbr.rel (0) target = $region25
    $region24: #{tpu_custom_call.1} parent=1 // pred_region
      %51 = dma.done [#allocation3], 128
    $region25: #{tpu_custom_call.1} parent=1 // pred_fallthru
      _
    // Predicated region
    $region26: #{tpu_custom_call.1} parent=1 // pred_check
      _
    $region27: #{tpu_custom_call.1} parent=1 // pred_check_branch
      %53 = sbr.rel (0) target = $region29
    $region28: #{tpu_custom_call.1} parent=1 // pred_region
      %54 = dma.done [#allocation6], 128
    $region29: #{tpu_custom_call.1} parent=1 // pred_fallthru
      _
    // Predicated region
    $region30: #{tpu_custom_call.1} parent=1 // pred_check
      _
    $region31: #{tpu_custom_call.1} parent=1 // pred_check_branch
      %56 = sbr.rel (0) target = $region33
    $region32: #{tpu_custom_call.1} parent=1 // pred_region
      %57 = dma.done [#allocation6], 512
    $region33: #{tpu_custom_call.1} parent=1 // pred_fallthru
      _
    %v58 = vld [vmem:[#allocation2] sm:$0xff]
    %v59 = vld [vmem:[#allocation5] sm:$0xff]
    %v60 = vld [vmem:[%s2] sm:$0x1]
    %v61 = vld [vmem:[#allocation7] sm:$0xff]
    %v62 = vld [vmem:[#allocation7 + $0x8] sm:$0xff]
    %v63 = vld [vmem:[#allocation7 + $0x10] sm:$0xff]
    %v64 = vld [vmem:[#allocation7 + $0x18] sm:$0xff]
    %v65 = vld [vmem:[%s4] sm:$0x1]
    %67 = vset.pattern.permute.xlu0 0
    %68 = vperm.xlu0 %67, %v58
    %v69 = vpop.permute.xlu0 %68
    %v71 = vlaneseq
    %v72 = vshrl.u32 %v71, 7
    %v73 = vsub.s32 0, %v72
    %v74 = vrot.slane %v59, %v73
    %v75 = vmul.f32 %v69, %v74
    %v76 = vadd.f32 %v75, 0.0
    %77 = vset.pattern.permute.xlu0 1
    %78 = vperm.xlu0 %77, %v58
    %v79 = vpop.permute.xlu0 %78
    %v81 = vlaneseq
    %v82 = vshrl.u32 %v81, 7
    %v83 = vsub.s32 1, %v82
    %v84 = vrot.slane %v59, %v83
    %v85 = vmul.f32 %v79, %v84
    %v86 = vadd.f32 %v76, %v85
    %87 = vset.pattern.permute.xlu0 2
    %88 = vperm.xlu0 %87, %v58
    %v89 = vpop.permute.xlu0 %88
    %v91 = vlaneseq
    %v92 = vshrl.u32 %v91, 7
    %v93 = vsub.s32 2, %v92
    %v94 = vrot.slane %v59, %v93
    %v95 = vmul.f32 %v89, %v94
    %v96 = vadd.f32 %v86, %v95
    %97 = vset.pattern.permute.xlu0 3
    %98 = vperm.xlu0 %97, %v58
    %v99 = vpop.permute.xlu0 %98
    %v101 = vlaneseq
    %v102 = vshrl.u32 %v101, 7
    %v103 = vsub.s32 3, %v102
    %v104 = vrot.slane %v59, %v103
    %v105 = vmul.f32 %v99, %v104
    %v106 = vadd.f32 %v96, %v105
    %107 = vset.pattern.permute.xlu0 4
    %108 = vperm.xlu0 %107, %v58
    %v109 = vpop.permute.xlu0 %108
    %v111 = vlaneseq
    %v112 = vshrl.u32 %v111, 7
    %v113 = vsub.s32 4, %v112
    %v114 = vrot.slane %v59, %v113
    %v115 = vmul.f32 %v109, %v114
    %v116 = vadd.f32 %v106, %v115
    %117 = vset.pattern.permute.xlu0 5
    %118 = vperm.xlu0 %117, %v58
    %v119 = vpop.permute.xlu0 %118
    %v121 = vlaneseq
    %v122 = vshrl.u32 %v121, 7
    %v123 = vsub.s32 5, %v122
    %v124 = vrot.slane %v59, %v123
    %v125 = vmul.f32 %v119, %v124
    %v126 = vadd.f32 %v116, %v125
    %127 = vset.pattern.permute.xlu0 6
    %128 = vperm.xlu0 %127, %v58
    %v129 = vpop.permute.xlu0 %128
    %v131 = vlaneseq
    %v132 = vshrl.u32 %v131, 7
    %v133 = vsub.s32 6, %v132
    %v134 = vrot.slane %v59, %v133
    %v135 = vmul.f32 %v129, %v134
    %v136 = vadd.f32 %v126, %v135
    %137 = vset.pattern.permute.xlu0 7
    %138 = vperm.xlu0 %137, %v58
    %v139 = vpop.permute.xlu0 %138
    %v141 = vlaneseq
    %v142 = vshrl.u32 %v141, 7
    %v143 = vsub.s32 7, %v142
    %v144 = vrot.slane %v59, %v143
    %v145 = vmul.f32 %v139, %v144
    %v146 = vadd.f32 %v136, %v145
    %v148 = vlaneseq
    %v149 = vshrl.u32 %v148, 7
    %v150 = vsub.s32 0, %v149
    %v151 = vrot.slane %v60, %v150
    %v153 = vadd.f32 %v146, %v151
    %vm154 = vcmp.ge.f32.partialorder %v153, 0.0
    %v155 = vmul.f32 %v153, 0.01
    %v156 = vsel %vm154, %v153, %v155
    %158 = vset.pattern.permute.xlu0 0
    %159 = vperm.xlu0 %158, %v156
    %v160 = vpop.permute.xlu0 %159
    %v162 = vlaneseq
    %v163 = vshrl.u32 %v162, 7
    %v164 = vsub.s32 0, %v163
    %v165 = vrot.slane %v61, %v164
    %v166 = vmul.f32 %v160, %v165
    %v167 = vadd.f32 %v166, 0.0
    %168 = vset.pattern.permute.xlu0 1
    %169 = vperm.xlu0 %168, %v156
    %v170 = vpop.permute.xlu0 %169
    %v172 = vlaneseq
    %v173 = vshrl.u32 %v172, 7
    %v174 = vsub.s32 1, %v173
    %v175 = vrot.slane %v61, %v174
    %v176 = vmul.f32 %v170, %v175
    %v177 = vadd.f32 %v167, %v176
    %178 = vset.pattern.permute.xlu0 2
    %179 = vperm.xlu0 %178, %v156
    %v180 = vpop.permute.xlu0 %179
    %v182 = vlaneseq
    %v183 = vshrl.u32 %v182, 7
    %v184 = vsub.s32 2, %v183
    %v185 = vrot.slane %v61, %v184
    %v186 = vmul.f32 %v180, %v185
    %v187 = vadd.f32 %v177, %v186
    %188 = vset.pattern.permute.xlu0 3
    %189 = vperm.xlu0 %188, %v156
    %v190 = vpop.permute.xlu0 %189
    %v192 = vlaneseq
    %v193 = vshrl.u32 %v192, 7
    %v194 = vsub.s32 3, %v193
    %v195 = vrot.slane %v61, %v194
    %v196 = vmul.f32 %v190, %v195
    %v197 = vadd.f32 %v187, %v196
    %198 = vset.pattern.permute.xlu0 4
    %199 = vperm.xlu0 %198, %v156
    %v200 = vpop.permute.xlu0 %199
    %v202 = vlaneseq
    %v203 = vshrl.u32 %v202, 7
    %v204 = vsub.s32 4, %v203
    %v205 = vrot.slane %v61, %v204
    %v206 = vmul.f32 %v200, %v205
    %v207 = vadd.f32 %v197, %v206
    %208 = vset.pattern.permute.xlu0 5
    %209 = vperm.xlu0 %208, %v156
    %v210 = vpop.permute.xlu0 %209
    %v212 = vlaneseq
    %v213 = vshrl.u32 %v212, 7
    %v214 = vsub.s32 5, %v213
    %v215 = vrot.slane %v61, %v214
    %v216 = vmul.f32 %v210, %v215
    %v217 = vadd.f32 %v207, %v216
    %218 = vset.pattern.permute.xlu0 6
    %219 = vperm.xlu0 %218, %v156
    %v220 = vpop.permute.xlu0 %219
    %v222 = vlaneseq
    %v223 = vshrl.u32 %v222, 7
    %v224 = vsub.s32 6, %v223
    %v225 = vrot.slane %v61, %v224
    %v226 = vmul.f32 %v220, %v225
    %v227 = vadd.f32 %v217, %v226
    %228 = vset.pattern.permute.xlu0 7
    %229 = vperm.xlu0 %228, %v156
    %v230 = vpop.permute.xlu0 %229
    %v232 = vlaneseq
    %v233 = vshrl.u32 %v232, 7
    %v234 = vsub.s32 7, %v233
    %v235 = vrot.slane %v61, %v234
    %v236 = vmul.f32 %v230, %v235
    %v237 = vadd.f32 %v227, %v236
    %238 = vset.pattern.permute.xlu0 8
    %239 = vperm.xlu0 %238, %v156
    %v240 = vpop.permute.xlu0 %239
    %v242 = vlaneseq
    %v243 = vshrl.u32 %v242, 7
    %v244 = vsub.s32 0, %v243
    %v245 = vrot.slane %v62, %v244
    %v246 = vmul.f32 %v240, %v245
    %v247 = vadd.f32 %v237, %v246
    %248 = vset.pattern.permute.xlu0 9
    %249 = vperm.xlu0 %248, %v156
    %v250 = vpop.permute.xlu0 %249
    %v252 = vlaneseq
    %v253 = vshrl.u32 %v252, 7
    %v254 = vsub.s32 1, %v253
    %v255 = vrot.slane %v62, %v254
    %v256 = vmul.f32 %v250, %v255
    %v257 = vadd.f32 %v247, %v256
    %258 = vset.pattern.permute.xlu0 10
    %259 = vperm.xlu0 %258, %v156
    %v260 = vpop.permute.xlu0 %259
    %v262 = vlaneseq
    %v263 = vshrl.u32 %v262, 7
    %v264 = vsub.s32 2, %v263
    %v265 = vrot.slane %v62, %v264
    %v266 = vmul.f32 %v260, %v265
    %v267 = vadd.f32 %v257, %v266
    %268 = vset.pattern.permute.xlu0 11
    %269 = vperm.xlu0 %268, %v156
    %v270 = vpop.permute.xlu0 %269
    %v272 = vlaneseq
    %v273 = vshrl.u32 %v272, 7
    %v274 = vsub.s32 3, %v273
    %v275 = vrot.slane %v62, %v274
    %v276 = vmul.f32 %v270, %v275
    %v277 = vadd.f32 %v267, %v276
    %278 = vset.pattern.permute.xlu0 12
    %279 = vperm.xlu0 %278, %v156
    %v280 = vpop.permute.xlu0 %279
    %v282 = vlaneseq
    %v283 = vshrl.u32 %v282, 7
    %v284 = vsub.s32 4, %v283
    %v285 = vrot.slane %v62, %v284
    %v286 = vmul.f32 %v280, %v285
    %v287 = vadd.f32 %v277, %v286
    %288 = vset.pattern.permute.xlu0 13
    %289 = vperm.xlu0 %288, %v156
    %v290 = vpop.permute.xlu0 %289
    %v292 = vlaneseq
    %v293 = vshrl.u32 %v292, 7
    %v294 = vsub.s32 5, %v293
    %v295 = vrot.slane %v62, %v294
    %v296 = vmul.f32 %v290, %v295
    %v297 = vadd.f32 %v287, %v296
    %298 = vset.pattern.permute.xlu0 14
    %299 = vperm.xlu0 %298, %v156
    %v300 = vpop.permute.xlu0 %299
    %v302 = vlaneseq
    %v303 = vshrl.u32 %v302, 7
    %v304 = vsub.s32 6, %v303
    %v305 = vrot.slane %v62, %v304
    %v306 = vmul.f32 %v300, %v305
    %v307 = vadd.f32 %v297, %v306
    %308 = vset.pattern.permute.xlu0 15
    %309 = vperm.xlu0 %308, %v156
    %v310 = vpop.permute.xlu0 %309
    %v312 = vlaneseq
    %v313 = vshrl.u32 %v312, 7
    %v314 = vsub.s32 7, %v313
    %v315 = vrot.slane %v62, %v314
    %v316 = vmul.f32 %v310, %v315
    %v317 = vadd.f32 %v307, %v316
    %318 = vset.pattern.permute.xlu0 16
    %319 = vperm.xlu0 %318, %v156
    %v320 = vpop.permute.xlu0 %319
    %v322 = vlaneseq
    %v323 = vshrl.u32 %v322, 7
    %v324 = vsub.s32 0, %v323
    %v325 = vrot.slane %v63, %v324
    %v326 = vmul.f32 %v320, %v325
    %v327 = vadd.f32 %v317, %v326
    %328 = vset.pattern.permute.xlu0 17
    %329 = vperm.xlu0 %328, %v156
    %v330 = vpop.permute.xlu0 %329
    %v332 = vlaneseq
    %v333 = vshrl.u32 %v332, 7
    %v334 = vsub.s32 1, %v333
    %v335 = vrot.slane %v63, %v334
    %v336 = vmul.f32 %v330, %v335
    %v337 = vadd.f32 %v327, %v336
    %338 = vset.pattern.permute.xlu0 18
    %339 = vperm.xlu0 %338, %v156
    %v340 = vpop.permute.xlu0 %339
    %v342 = vlaneseq
    %v343 = vshrl.u32 %v342, 7
    %v344 = vsub.s32 2, %v343
    %v345 = vrot.slane %v63, %v344
    %v346 = vmul.f32 %v340, %v345
    %v347 = vadd.f32 %v337, %v346
    %348 = vset.pattern.permute.xlu0 19
    %349 = vperm.xlu0 %348, %v156
    %v350 = vpop.permute.xlu0 %349
    %v352 = vlaneseq
    %v353 = vshrl.u32 %v352, 7
    %v354 = vsub.s32 3, %v353
    %v355 = vrot.slane %v63, %v354
    %v356 = vmul.f32 %v350, %v355
    %v357 = vadd.f32 %v347, %v356
    %358 = vset.pattern.permute.xlu0 20
    %359 = vperm.xlu0 %358, %v156
    %v360 = vpop.permute.xlu0 %359
    %v362 = vlaneseq
    %v363 = vshrl.u32 %v362, 7
    %v364 = vsub.s32 4, %v363
    %v365 = vrot.slane %v63, %v364
    %v366 = vmul.f32 %v360, %v365
    %v367 = vadd.f32 %v357, %v366
    %368 = vset.pattern.permute.xlu0 21
    %369 = vperm.xlu0 %368, %v156
    %v370 = vpop.permute.xlu0 %369
    %v372 = vlaneseq
    %v373 = vshrl.u32 %v372, 7
    %v374 = vsub.s32 5, %v373
    %v375 = vrot.slane %v63, %v374
    %v376 = vmul.f32 %v370, %v375
    %v377 = vadd.f32 %v367, %v376
    %378 = vset.pattern.permute.xlu0 22
    %379 = vperm.xlu0 %378, %v156
    %v380 = vpop.permute.xlu0 %379
    %v382 = vlaneseq
    %v383 = vshrl.u32 %v382, 7
    %v384 = vsub.s32 6, %v383
    %v385 = vrot.slane %v63, %v384
    %v386 = vmul.f32 %v380, %v385
    %v387 = vadd.f32 %v377, %v386
    %388 = vset.pattern.permute.xlu0 23
    %389 = vperm.xlu0 %388, %v156
    %v390 = vpop.permute.xlu0 %389
    %v392 = vlaneseq
    %v393 = vshrl.u32 %v392, 7
    %v394 = vsub.s32 7, %v393
    %v395 = vrot.slane %v63, %v394
    %v396 = vmul.f32 %v390, %v395
    %v397 = vadd.f32 %v387, %v396
    %398 = vset.pattern.permute.xlu0 24
    %399 = vperm.xlu0 %398, %v156
    %v400 = vpop.permute.xlu0 %399
    %v402 = vlaneseq
    %v403 = vshrl.u32 %v402, 7
    %v404 = vsub.s32 0, %v403
    %v405 = vrot.slane %v64, %v404
    %v406 = vmul.f32 %v400, %v405
    %v407 = vadd.f32 %v397, %v406
    %408 = vset.pattern.permute.xlu0 25
    %409 = vperm.xlu0 %408, %v156
    %v410 = vpop.permute.xlu0 %409
    %v412 = vlaneseq
    %v413 = vshrl.u32 %v412, 7
    %v414 = vsub.s32 1, %v413
    %v415 = vrot.slane %v64, %v414
    %v416 = vmul.f32 %v410, %v415
    %v417 = vadd.f32 %v407, %v416
    %418 = vset.pattern.permute.xlu0 26
    %419 = vperm.xlu0 %418, %v156
    %v420 = vpop.permute.xlu0 %419
    %v422 = vlaneseq
    %v423 = vshrl.u32 %v422, 7
    %v424 = vsub.s32 2, %v423
    %v425 = vrot.slane %v64, %v424
    %v426 = vmul.f32 %v420, %v425
    %v427 = vadd.f32 %v417, %v426
    %428 = vset.pattern.permute.xlu0 27
    %429 = vperm.xlu0 %428, %v156
    %v430 = vpop.permute.xlu0 %429
    %v432 = vlaneseq
    %v433 = vshrl.u32 %v432, 7
    %v434 = vsub.s32 3, %v433
    %v435 = vrot.slane %v64, %v434
    %v436 = vmul.f32 %v430, %v435
    %v437 = vadd.f32 %v427, %v436
    %438 = vset.pattern.permute.xlu0 28
    %439 = vperm.xlu0 %438, %v156
    %v440 = vpop.permute.xlu0 %439
    %v442 = vlaneseq
    %v443 = vshrl.u32 %v442, 7
    %v444 = vsub.s32 4, %v443
    %v445 = vrot.slane %v64, %v444
    %v446 = vmul.f32 %v440, %v445
    %v447 = vadd.f32 %v437, %v446
    %448 = vset.pattern.permute.xlu0 29
    %449 = vperm.xlu0 %448, %v156
    %v450 = vpop.permute.xlu0 %449
    %v452 = vlaneseq
    %v453 = vshrl.u32 %v452, 7
    %v454 = vsub.s32 5, %v453
    %v455 = vrot.slane %v64, %v454
    %v456 = vmul.f32 %v450, %v455
    %v457 = vadd.f32 %v447, %v456
    %458 = vset.pattern.permute.xlu0 30
    %459 = vperm.xlu0 %458, %v156
    %v460 = vpop.permute.xlu0 %459
    %v462 = vlaneseq
    %v463 = vshrl.u32 %v462, 7
    %v464 = vsub.s32 6, %v463
    %v465 = vrot.slane %v64, %v464
    %v466 = vmul.f32 %v460, %v465
    %v467 = vadd.f32 %v457, %v466
    %468 = vset.pattern.permute.xlu0 31
    %469 = vperm.xlu0 %468, %v156
    %v470 = vpop.permute.xlu0 %469
    %v472 = vlaneseq
    %v473 = vshrl.u32 %v472, 7
    %v474 = vsub.s32 7, %v473
    %v475 = vrot.slane %v64, %v474
    %v476 = vmul.f32 %v470, %v475
    %v477 = vadd.f32 %v467, %v476
    %v479 = vlaneseq
    %v480 = vshrl.u32 %v479, 7
    %v481 = vsub.s32 0, %v480
    %v482 = vrot.slane %v65, %v481
    %v484 = vadd.f32 %v477, %v482
    %v485 = vmul.f32 %v484, 1.442695
    %v486 = vpow.pop %v485
    %487 = vst [vmem:[#allocation8] sm:$0xff] %v486
    // Predicated region
    $region34: #{tpu_custom_call.1} parent=1 // pred_check
      _
    $region35: #{tpu_custom_call.1} parent=1 // pred_check_branch
      %489 = sbr.rel (0) target = $region37
    $region36: #{tpu_custom_call.1} parent=1 // pred_region
      %s491 = ssub.s32 128, 128
      %492 = vsyncadd [#allocation4], %s491
      %s494 = sshll.u32 [#allocation8], 4
      %s495 = int_to_ptr.vmem [resolvable:$true] %s494
      %497 = dma.vmem_to_hbm [thread:$0]  %s495, 128, %s5, [#allocation4]
    $region37: #{tpu_custom_call.1} parent=1 // pred_fallthru
      _
    // Predicated region
    $region38: #{tpu_custom_call.1} parent=1 // pred_check
      _
    $region39: #{tpu_custom_call.1} parent=1 // pred_check_branch
      %499 = sbr.rel (0) target = $region41
    $region40: #{tpu_custom_call.1} parent=1 // pred_region
      %500 = dma.done [#allocation4], 128
    $region41: #{tpu_custom_call.1} parent=1 // pred_fallthru
      _
    %501 = vsyncpa [#allocation3], 1
    %502 = vsyncpa [#allocation6], 1
    %503 = vsyncpa [#allocation4], 1

</llo_original>
